<compile_context>
chip_gen: v6e
topology: v6e:2x2x1
jax: 0.10.0
libtpu: 0.0.40
codegen_flags: <defaults>
</compile_context>

<pallas_src>
import functools

import jax
import jax.numpy as jnp
from jax.experimental import pallas as pl
from jax.experimental.pallas import tpu as pltpu


def _clip_embedding_kernel(tok_ref, pos_ref, table_ref, out_ref, rows_ref, sem,
                           *, tile_rows, n_vocab):
    # tok_ref   : (N_pad,)            int32, SMEM (scalar prefetch) — flattened token ids.
    # pos_ref   : (tile_rows, E)      f32, VMEM — positional rows for one chunk (constant block,
    #                                  DMA'd once and kept resident across all grid steps).
    # table_ref : (V, E)              f32, HBM (pl.ANY) — embedding table, gathered manually.
    # out_ref   : (1, tile_rows, E)   f32, VMEM — output chunk.
    # rows_ref  : (tile_rows, E)      f32, VMEM scratch — gathered embedding rows.
    # sem       : single DMA semaphore shared by this chunk's row copies.
    c = pl.program_id(0)
    base = c * tile_rows

    # Issue every row-gather DMA of this chunk before waiting on any of them, so all
    # `tile_rows` copies are in flight at once (latency hidden across the batch of copies).
    for i in range(tile_rows):
        tok = tok_ref[base + i]
        tok = jnp.clip(tok, 0, n_vocab - 1)  # guard the raw DMA index (nn.Embedding precondition)
        pltpu.make_async_copy(
            table_ref.at[pl.ds(tok, 1), :],   # (1, E) table row in HBM
            rows_ref.at[pl.ds(i, 1), :],      # (1, E) destination row in VMEM scratch
            sem,
        ).start()

    # Wait for all copies: every copy signals the same semaphore and every wait consumes one
    # row's worth, so after this loop the whole chunk has landed (source index is a placeholder;
    # only the copy size matters for the wait).
    for i in range(tile_rows):
        pltpu.make_async_copy(
            table_ref.at[pl.ds(0, 1), :],
            rows_ref.at[pl.ds(i, 1), :],
            sem,
        ).wait()

    # Full-tile (tile_rows, E) add + store: sublane/lane dense, unmasked vst.
    out_ref[0] = rows_ref[...] + pos_ref[...]


def clip_embedding(tokens, token_table, pos_embedding, *, seqs_per_chunk=None):
    """tokens: (B, T) int; token_table: (V, E) f32; pos_embedding: (T, E) f32 -> (B, T, E) f32."""
    B, T = tokens.shape
    V, E = token_table.shape
    assert pos_embedding.shape == (T, E)

    # One chunk = k whole sequences (so every chunk's positional rows are pos tiled k times).
    # Target ~256 gathered rows per grid step to amortize per-step overhead.
    if seqs_per_chunk is None:
        k = min(B, max(1, 256 // T))
    else:
        k = max(1, min(B, seqs_per_chunk))
    num_chunks = -(-B // k)
    B_pad = num_chunks * k
    tile_rows = k * T
    # TODO(synk): for very long sequences (T >> 256) chunk *within* a sequence instead of by
    # whole sequences; CLIP's n_tokens (77) never hits that regime.

    # Flat 1-D token ids for SMEM (avoids 2-D SMEM padding), padded to a whole number of chunks.
    tok_flat = tokens.astype(jnp.int32).reshape(B * T)
    if B_pad != B:
        tok_flat = jnp.concatenate(
            [tok_flat, jnp.zeros(((B_pad - B) * T,), jnp.int32)])

    # Chunk-shaped positional block (layout plumbing only; the add happens in the kernel).
    pos_chunk = jnp.tile(pos_embedding.astype(jnp.float32), (k, 1))      # (tile_rows, E)

    kernel = functools.partial(_clip_embedding_kernel, tile_rows=tile_rows, n_vocab=V)

    cost = pl.CostEstimate(
        flops=B_pad * T * E,                    # the positional add
        transcendentals=0,
        bytes_accessed=(B_pad * T * 4           # token ids
                        + B_pad * T * E * 4     # gathered table rows
                        + tile_rows * E * 4     # pos block, fetched once
                        + B_pad * T * E * 4),   # output
    )

    out = pl.pallas_call(
        kernel,
        out_shape=jax.ShapeDtypeStruct((num_chunks, tile_rows, E), jnp.float32),
        grid_spec=pltpu.PrefetchScalarGridSpec(
            num_scalar_prefetch=1,              # flattened token ids -> SMEM
            grid=(num_chunks,),
            in_specs=[
                # Positional rows: constant block index -> fetched once, VMEM-resident.
                pl.BlockSpec((tile_rows, E), lambda c, tok: (0, 0)),
                # Embedding table stays in HBM; rows gathered with manual DMAs in the kernel.
                pl.BlockSpec(memory_space=pl.ANY),
            ],
            out_specs=pl.BlockSpec((1, tile_rows, E), lambda c, tok: (c, 0, 0)),
            scratch_shapes=[
                pltpu.VMEM((tile_rows, E), jnp.float32),   # gathered rows
                pltpu.SemaphoreType.DMA,                   # shared by the chunk's row copies
            ],
        ),
        compiler_params=pltpu.CompilerParams(
            # Each step is self-contained, so the flattened chunk axis can be split across
            # v7x's two TensorCores; harmless (single TC) on v5e/v6e.
            dimension_semantics=("parallel",),
        ),
        cost_estimate=cost,
    )(tok_flat, pos_chunk, token_table.astype(jnp.float32))

    # (num_chunks, tile_rows, E) -> (B, T, E); drop padded sequences if any.
    out = out.reshape(B_pad * T, E)[: B * T].reshape(B, T, E)
    return out


if __name__ == "__main__":
    # Small, TPU-tile-friendly sizes consistent with CLIPEmbedding(n_vocab, n_embed, n_tokens).
    n_vocab, n_embed, n_tokens = 64, 128, 8

    key = jax.random.PRNGKey(0)
    k_tok, k_table, k_pos = jax.random.split(key, 3)

    token_table = jax.random.normal(k_table, (n_vocab, n_embed), dtype=jnp.float32) * 0.02
    # PyTorch inits position_embedding to zeros; use small random values so the add is exercised.
    pos_embedding = jax.random.normal(k_pos, (n_tokens, n_embed), dtype=jnp.float32) * 0.01

    ok = True

    # Case 1: batch that fits exactly in one chunk.
    batch = 2
    tokens = jax.random.randint(k_tok, (batch, n_tokens), 0, n_vocab, dtype=jnp.int32)
    out = jax.block_until_ready(clip_embedding(tokens, token_table, pos_embedding))
    ref = token_table[tokens] + pos_embedding[None, :, :]
    ok &= out.shape == (batch, n_tokens, n_embed)
    ok &= bool(jnp.allclose(out, ref, atol=1e-6, rtol=1e-6))

    # Case 2: odd batch + explicit chunking -> exercises padding and the multi-chunk grid.
    batch = 3
    tokens = jax.random.randint(jax.random.PRNGKey(1), (batch, n_tokens), 0, n_vocab,
                                dtype=jnp.int32)
    out = jax.block_until_ready(
        clip_embedding(tokens, token_table, pos_embedding, seqs_per_chunk=2))
    ref = token_table[tokens] + pos_embedding[None, :, :]
    ok &= out.shape == (batch, n_tokens, n_embed)
    ok &= bool(jnp.allclose(out, ref, atol=1e-6, rtol=1e-6))

    assert ok, "mismatch vs reference"
    print("KERNEL_OK")
</pallas_src>

<mosaic_0001>
module attributes {stable_mosaic.version = 11 : i64} {
  func.func @_clip_embedding_kernel(%arg0: i32, %arg1: memref<16xi32, #tpu.memory_space<smem>>, %arg2: memref<16x128xf32, #tpu.memory_space<vmem>>, %arg3: memref<64x128xf32, #tpu.memory_space<any>>, %arg4: memref<1x16x128xf32, #tpu.memory_space<vmem>>, %arg5: memref<16x128xf32, #tpu.memory_space<vmem>>, %arg6: memref<!tpu.dma_semaphore, #tpu.memory_space<semaphore_mem>>) attributes {dimension_semantics = [#tpu.dimension_semantics<parallel>], iteration_bounds = array<i64: 1>, scalar_prefetch = 1 : i64, scratch_operands = 2 : i64, tpu.core_type = #tpu.core_type<tc>, window_params = [{pipeline_mode = #tpu.pipeline_mode<synchronous>, transform_indices = @transform_0, window_bounds = array<i64: 16, 128>}, {}, {transform_indices = @transform_2, window_bounds = array<i64: 1, 16, 128>}]} {
    %c16_i32 = arith.constant 16 : i32
    %0 = arith.muli %arg0, %c16_i32 : i32
    %c0_i32 = arith.constant 0 : i32
    %1 = arith.addi %0, %c0_i32 : i32
    %2 = arith.index_cast %1 : i32 to index
    %3 = memref.load %arg1[%2] : memref<16xi32, #tpu.memory_space<smem>>
    %c0_i32_0 = arith.constant 0 : i32
    %c63_i32 = arith.constant 63 : i32
    %4 = arith.maxsi %c0_i32_0, %3 : i32
    %5 = arith.minsi %c63_i32, %4 : i32
    %c0_i32_1 = arith.constant 0 : i32
    %6 = tpu.memref_slice %arg3[%5, %c0_i32_1] : memref<64x128xf32, #tpu.memory_space<any>> -> memref<1x128xf32, #tpu.memory_space<any>>
    %c0_i32_2 = arith.constant 0 : i32
    %c0_i32_3 = arith.constant 0 : i32
    %7 = tpu.memref_slice %arg5[%c0_i32_2, %c0_i32_3] : memref<16x128xf32, #tpu.memory_space<vmem>> -> memref<1x128xf32, #tpu.memory_space<vmem>>
    tpu.enqueue_dma source(%6 : memref<1x128xf32, #tpu.memory_space<any>>) target(%7 : memref<1x128xf32, #tpu.memory_space<vmem>>) target_semaphore(%arg6 : memref<!tpu.dma_semaphore, #tpu.memory_space<semaphore_mem>>)
    %c1_i32 = arith.constant 1 : i32
    %8 = arith.addi %0, %c1_i32 : i32
    %9 = arith.index_cast %8 : i32 to index
    %10 = memref.load %arg1[%9] : memref<16xi32, #tpu.memory_space<smem>>
    %c0_i32_4 = arith.constant 0 : i32
    %c63_i32_5 = arith.constant 63 : i32
    %11 = arith.maxsi %c0_i32_4, %10 : i32
    %12 = arith.minsi %c63_i32_5, %11 : i32
    %c0_i32_6 = arith.constant 0 : i32
    %13 = tpu.memref_slice %arg3[%12, %c0_i32_6] : memref<64x128xf32, #tpu.memory_space<any>> -> memref<1x128xf32, #tpu.memory_space<any>>
    %c1_i32_7 = arith.constant 1 : i32
    %c0_i32_8 = arith.constant 0 : i32
    %14 = tpu.memref_slice %arg5[%c1_i32_7, %c0_i32_8] : memref<16x128xf32, #tpu.memory_space<vmem>> -> memref<1x128xf32, #tpu.memory_space<vmem>>
    tpu.enqueue_dma source(%13 : memref<1x128xf32, #tpu.memory_space<any>>) target(%14 : memref<1x128xf32, #tpu.memory_space<vmem>>) target_semaphore(%arg6 : memref<!tpu.dma_semaphore, #tpu.memory_space<semaphore_mem>>)
    %c2_i32 = arith.constant 2 : i32
    %15 = arith.addi %0, %c2_i32 : i32
    %16 = arith.index_cast %15 : i32 to index
    %17 = memref.load %arg1[%16] : memref<16xi32, #tpu.memory_space<smem>>
    %c0_i32_9 = arith.constant 0 : i32
    %c63_i32_10 = arith.constant 63 : i32
    %18 = arith.maxsi %c0_i32_9, %17 : i32
    %19 = arith.minsi %c63_i32_10, %18 : i32
    %c0_i32_11 = arith.constant 0 : i32
    %20 = tpu.memref_slice %arg3[%19, %c0_i32_11] : memref<64x128xf32, #tpu.memory_space<any>> -> memref<1x128xf32, #tpu.memory_space<any>>
    %c2_i32_12 = arith.constant 2 : i32
    %c0_i32_13 = arith.constant 0 : i32
    %21 = tpu.memref_slice %arg5[%c2_i32_12, %c0_i32_13] : memref<16x128xf32, #tpu.memory_space<vmem>> -> memref<1x128xf32, #tpu.memory_space<vmem>>
    tpu.enqueue_dma source(%20 : memref<1x128xf32, #tpu.memory_space<any>>) target(%21 : memref<1x128xf32, #tpu.memory_space<vmem>>) target_semaphore(%arg6 : memref<!tpu.dma_semaphore, #tpu.memory_space<semaphore_mem>>)
    %c3_i32 = arith.constant 3 : i32
    %22 = arith.addi %0, %c3_i32 : i32
    %23 = arith.index_cast %22 : i32 to index
    %24 = memref.load %arg1[%23] : memref<16xi32, #tpu.memory_space<smem>>
    %c0_i32_14 = arith.constant 0 : i32
    %c63_i32_15 = arith.constant 63 : i32
    %25 = arith.maxsi %c0_i32_14, %24 : i32
    %26 = arith.minsi %c63_i32_15, %25 : i32
    %c0_i32_16 = arith.constant 0 : i32
    %27 = tpu.memref_slice %arg3[%26, %c0_i32_16] : memref<64x128xf32, #tpu.memory_space<any>> -> memref<1x128xf32, #tpu.memory_space<any>>
    %c3_i32_17 = arith.constant 3 : i32
    %c0_i32_18 = arith.constant 0 : i32
    %28 = tpu.memref_slice %arg5[%c3_i32_17, %c0_i32_18] : memref<16x128xf32, #tpu.memory_space<vmem>> -> memref<1x128xf32, #tpu.memory_space<vmem>>
    tpu.enqueue_dma source(%27 : memref<1x128xf32, #tpu.memory_space<any>>) target(%28 : memref<1x128xf32, #tpu.memory_space<vmem>>) target_semaphore(%arg6 : memref<!tpu.dma_semaphore, #tpu.memory_space<semaphore_mem>>)
    %c4_i32 = arith.constant 4 : i32
    %29 = arith.addi %0, %c4_i32 : i32
    %30 = arith.index_cast %29 : i32 to index
    %31 = memref.load %arg1[%30] : memref<16xi32, #tpu.memory_space<smem>>
    %c0_i32_19 = arith.constant 0 : i32
    %c63_i32_20 = arith.constant 63 : i32
    %32 = arith.maxsi %c0_i32_19, %31 : i32
    %33 = arith.minsi %c63_i32_20, %32 : i32
    %c0_i32_21 = arith.constant 0 : i32
    %34 = tpu.memref_slice %arg3[%33, %c0_i32_21] : memref<64x128xf32, #tpu.memory_space<any>> -> memref<1x128xf32, #tpu.memory_space<any>>
    %c4_i32_22 = arith.constant 4 : i32
    %c0_i32_23 = arith.constant 0 : i32
    %35 = tpu.memref_slice %arg5[%c4_i32_22, %c0_i32_23] : memref<16x128xf32, #tpu.memory_space<vmem>> -> memref<1x128xf32, #tpu.memory_space<vmem>>
    tpu.enqueue_dma source(%34 : memref<1x128xf32, #tpu.memory_space<any>>) target(%35 : memref<1x128xf32, #tpu.memory_space<vmem>>) target_semaphore(%arg6 : memref<!tpu.dma_semaphore, #tpu.memory_space<semaphore_mem>>)
    %c5_i32 = arith.constant 5 : i32
    %36 = arith.addi %0, %c5_i32 : i32
    %37 = arith.index_cast %36 : i32 to index
    %38 = memref.load %arg1[%37] : memref<16xi32, #tpu.memory_space<smem>>
    %c0_i32_24 = arith.constant 0 : i32
    %c63_i32_25 = arith.constant 63 : i32
    %39 = arith.maxsi %c0_i32_24, %38 : i32
    %40 = arith.minsi %c63_i32_25, %39 : i32
    %c0_i32_26 = arith.constant 0 : i32
    %41 = tpu.memref_slice %arg3[%40, %c0_i32_26] : memref<64x128xf32, #tpu.memory_space<any>> -> memref<1x128xf32, #tpu.memory_space<any>>
    %c5_i32_27 = arith.constant 5 : i32
    %c0_i32_28 = arith.constant 0 : i32
    %42 = tpu.memref_slice %arg5[%c5_i32_27, %c0_i32_28] : memref<16x128xf32, #tpu.memory_space<vmem>> -> memref<1x128xf32, #tpu.memory_space<vmem>>
    tpu.enqueue_dma source(%41 : memref<1x128xf32, #tpu.memory_space<any>>) target(%42 : memref<1x128xf32, #tpu.memory_space<vmem>>) target_semaphore(%arg6 : memref<!tpu.dma_semaphore, #tpu.memory_space<semaphore_mem>>)
    %c6_i32 = arith.constant 6 : i32
    %43 = arith.addi %0, %c6_i32 : i32
    %44 = arith.index_cast %43 : i32 to index
    %45 = memref.load %arg1[%44] : memref<16xi32, #tpu.memory_space<smem>>
    %c0_i32_29 = arith.constant 0 : i32
    %c63_i32_30 = arith.constant 63 : i32
    %46 = arith.maxsi %c0_i32_29, %45 : i32
    %47 = arith.minsi %c63_i32_30, %46 : i32
    %c0_i32_31 = arith.constant 0 : i32
    %48 = tpu.memref_slice %arg3[%47, %c0_i32_31] : memref<64x128xf32, #tpu.memory_space<any>> -> memref<1x128xf32, #tpu.memory_space<any>>
    %c6_i32_32 = arith.constant 6 : i32
    %c0_i32_33 = arith.constant 0 : i32
    %49 = tpu.memref_slice %arg5[%c6_i32_32, %c0_i32_33] : memref<16x128xf32, #tpu.memory_space<vmem>> -> memref<1x128xf32, #tpu.memory_space<vmem>>
    tpu.enqueue_dma source(%48 : memref<1x128xf32, #tpu.memory_space<any>>) target(%49 : memref<1x128xf32, #tpu.memory_space<vmem>>) target_semaphore(%arg6 : memref<!tpu.dma_semaphore, #tpu.memory_space<semaphore_mem>>)
    %c7_i32 = arith.constant 7 : i32
    %50 = arith.addi %0, %c7_i32 : i32
    %51 = arith.index_cast %50 : i32 to index
    %52 = memref.load %arg1[%51] : memref<16xi32, #tpu.memory_space<smem>>
    %c0_i32_34 = arith.constant 0 : i32
    %c63_i32_35 = arith.constant 63 : i32
    %53 = arith.maxsi %c0_i32_34, %52 : i32
    %54 = arith.minsi %c63_i32_35, %53 : i32
    %c0_i32_36 = arith.constant 0 : i32
    %55 = tpu.memref_slice %arg3[%54, %c0_i32_36] : memref<64x128xf32, #tpu.memory_space<any>> -> memref<1x128xf32, #tpu.memory_space<any>>
    %c7_i32_37 = arith.constant 7 : i32
    %c0_i32_38 = arith.constant 0 : i32
    %56 = tpu.memref_slice %arg5[%c7_i32_37, %c0_i32_38] : memref<16x128xf32, #tpu.memory_space<vmem>> -> memref<1x128xf32, #tpu.memory_space<vmem>>
    tpu.enqueue_dma source(%55 : memref<1x128xf32, #tpu.memory_space<any>>) target(%56 : memref<1x128xf32, #tpu.memory_space<vmem>>) target_semaphore(%arg6 : memref<!tpu.dma_semaphore, #tpu.memory_space<semaphore_mem>>)
    %c8_i32 = arith.constant 8 : i32
    %57 = arith.addi %0, %c8_i32 : i32
    %58 = arith.index_cast %57 : i32 to index
    %59 = memref.load %arg1[%58] : memref<16xi32, #tpu.memory_space<smem>>
    %c0_i32_39 = arith.constant 0 : i32
    %c63_i32_40 = arith.constant 63 : i32
    %60 = arith.maxsi %c0_i32_39, %59 : i32
    %61 = arith.minsi %c63_i32_40, %60 : i32
    %c0_i32_41 = arith.constant 0 : i32
    %62 = tpu.memref_slice %arg3[%61, %c0_i32_41] : memref<64x128xf32, #tpu.memory_space<any>> -> memref<1x128xf32, #tpu.memory_space<any>>
    %c8_i32_42 = arith.constant 8 : i32
    %c0_i32_43 = arith.constant 0 : i32
    %63 = tpu.memref_slice %arg5[%c8_i32_42, %c0_i32_43] : memref<16x128xf32, #tpu.memory_space<vmem>> -> memref<1x128xf32, #tpu.memory_space<vmem>>
    tpu.enqueue_dma source(%62 : memref<1x128xf32, #tpu.memory_space<any>>) target(%63 : memref<1x128xf32, #tpu.memory_space<vmem>>) target_semaphore(%arg6 : memref<!tpu.dma_semaphore, #tpu.memory_space<semaphore_mem>>)
    %c9_i32 = arith.constant 9 : i32
    %64 = arith.addi %0, %c9_i32 : i32
    %65 = arith.index_cast %64 : i32 to index
    %66 = memref.load %arg1[%65] : memref<16xi32, #tpu.memory_space<smem>>
    %c0_i32_44 = arith.constant 0 : i32
    %c63_i32_45 = arith.constant 63 : i32
    %67 = arith.maxsi %c0_i32_44, %66 : i32
    %68 = arith.minsi %c63_i32_45, %67 : i32
    %c0_i32_46 = arith.constant 0 : i32
    %69 = tpu.memref_slice %arg3[%68, %c0_i32_46] : memref<64x128xf32, #tpu.memory_space<any>> -> memref<1x128xf32, #tpu.memory_space<any>>
    %c9_i32_47 = arith.constant 9 : i32
    %c0_i32_48 = arith.constant 0 : i32
    %70 = tpu.memref_slice %arg5[%c9_i32_47, %c0_i32_48] : memref<16x128xf32, #tpu.memory_space<vmem>> -> memref<1x128xf32, #tpu.memory_space<vmem>>
    tpu.enqueue_dma source(%69 : memref<1x128xf32, #tpu.memory_space<any>>) target(%70 : memref<1x128xf32, #tpu.memory_space<vmem>>) target_semaphore(%arg6 : memref<!tpu.dma_semaphore, #tpu.memory_space<semaphore_mem>>)
    %c10_i32 = arith.constant 10 : i32
    %71 = arith.addi %0, %c10_i32 : i32
    %72 = arith.index_cast %71 : i32 to index
    %73 = memref.load %arg1[%72] : memref<16xi32, #tpu.memory_space<smem>>
    %c0_i32_49 = arith.constant 0 : i32
    %c63_i32_50 = arith.constant 63 : i32
    %74 = arith.maxsi %c0_i32_49, %73 : i32
    %75 = arith.minsi %c63_i32_50, %74 : i32
    %c0_i32_51 = arith.constant 0 : i32
    %76 = tpu.memref_slice %arg3[%75, %c0_i32_51] : memref<64x128xf32, #tpu.memory_space<any>> -> memref<1x128xf32, #tpu.memory_space<any>>
    %c10_i32_52 = arith.constant 10 : i32
    %c0_i32_53 = arith.constant 0 : i32
    %77 = tpu.memref_slice %arg5[%c10_i32_52, %c0_i32_53] : memref<16x128xf32, #tpu.memory_space<vmem>> -> memref<1x128xf32, #tpu.memory_space<vmem>>
    tpu.enqueue_dma source(%76 : memref<1x128xf32, #tpu.memory_space<any>>) target(%77 : memref<1x128xf32, #tpu.memory_space<vmem>>) target_semaphore(%arg6 : memref<!tpu.dma_semaphore, #tpu.memory_space<semaphore_mem>>)
    %c11_i32 = arith.constant 11 : i32
    %78 = arith.addi %0, %c11_i32 : i32
    %79 = arith.index_cast %78 : i32 to index
    %80 = memref.load %arg1[%79] : memref<16xi32, #tpu.memory_space<smem>>
    %c0_i32_54 = arith.constant 0 : i32
    %c63_i32_55 = arith.constant 63 : i32
    %81 = arith.maxsi %c0_i32_54, %80 : i32
    %82 = arith.minsi %c63_i32_55, %81 : i32
    %c0_i32_56 = arith.constant 0 : i32
    %83 = tpu.memref_slice %arg3[%82, %c0_i32_56] : memref<64x128xf32, #tpu.memory_space<any>> -> memref<1x128xf32, #tpu.memory_space<any>>
    %c11_i32_57 = arith.constant 11 : i32
    %c0_i32_58 = arith.constant 0 : i32
    %84 = tpu.memref_slice %arg5[%c11_i32_57, %c0_i32_58] : memref<16x128xf32, #tpu.memory_space<vmem>> -> memref<1x128xf32, #tpu.memory_space<vmem>>
    tpu.enqueue_dma source(%83 : memref<1x128xf32, #tpu.memory_space<any>>) target(%84 : memref<1x128xf32, #tpu.memory_space<vmem>>) target_semaphore(%arg6 : memref<!tpu.dma_semaphore, #tpu.memory_space<semaphore_mem>>)
    %c12_i32 = arith.constant 12 : i32
    %85 = arith.addi %0, %c12_i32 : i32
    %86 = arith.index_cast %85 : i32 to index
    %87 = memref.load %arg1[%86] : memref<16xi32, #tpu.memory_space<smem>>
    %c0_i32_59 = arith.constant 0 : i32
    %c63_i32_60 = arith.constant 63 : i32
    %88 = arith.maxsi %c0_i32_59, %87 : i32
    %89 = arith.minsi %c63_i32_60, %88 : i32
    %c0_i32_61 = arith.constant 0 : i32
    %90 = tpu.memref_slice %arg3[%89, %c0_i32_61] : memref<64x128xf32, #tpu.memory_space<any>> -> memref<1x128xf32, #tpu.memory_space<any>>
    %c12_i32_62 = arith.constant 12 : i32
    %c0_i32_63 = arith.constant 0 : i32
    %91 = tpu.memref_slice %arg5[%c12_i32_62, %c0_i32_63] : memref<16x128xf32, #tpu.memory_space<vmem>> -> memref<1x128xf32, #tpu.memory_space<vmem>>
    tpu.enqueue_dma source(%90 : memref<1x128xf32, #tpu.memory_space<any>>) target(%91 : memref<1x128xf32, #tpu.memory_space<vmem>>) target_semaphore(%arg6 : memref<!tpu.dma_semaphore, #tpu.memory_space<semaphore_mem>>)
    %c13_i32 = arith.constant 13 : i32
    %92 = arith.addi %0, %c13_i32 : i32
    %93 = arith.index_cast %92 : i32 to index
    %94 = memref.load %arg1[%93] : memref<16xi32, #tpu.memory_space<smem>>
    %c0_i32_64 = arith.constant 0 : i32
    %c63_i32_65 = arith.constant 63 : i32
    %95 = arith.maxsi %c0_i32_64, %94 : i32
    %96 = arith.minsi %c63_i32_65, %95 : i32
    %c0_i32_66 = arith.constant 0 : i32
    %97 = tpu.memref_slice %arg3[%96, %c0_i32_66] : memref<64x128xf32, #tpu.memory_space<any>> -> memref<1x128xf32, #tpu.memory_space<any>>
    %c13_i32_67 = arith.constant 13 : i32
    %c0_i32_68 = arith.constant 0 : i32
    %98 = tpu.memref_slice %arg5[%c13_i32_67, %c0_i32_68] : memref<16x128xf32, #tpu.memory_space<vmem>> -> memref<1x128xf32, #tpu.memory_space<vmem>>
    tpu.enqueue_dma source(%97 : memref<1x128xf32, #tpu.memory_space<any>>) target(%98 : memref<1x128xf32, #tpu.memory_space<vmem>>) target_semaphore(%arg6 : memref<!tpu.dma_semaphore, #tpu.memory_space<semaphore_mem>>)
    %c14_i32 = arith.constant 14 : i32
    %99 = arith.addi %0, %c14_i32 : i32
    %100 = arith.index_cast %99 : i32 to index
    %101 = memref.load %arg1[%100] : memref<16xi32, #tpu.memory_space<smem>>
    %c0_i32_69 = arith.constant 0 : i32
    %c63_i32_70 = arith.constant 63 : i32
    %102 = arith.maxsi %c0_i32_69, %101 : i32
    %103 = arith.minsi %c63_i32_70, %102 : i32
    %c0_i32_71 = arith.constant 0 : i32
    %104 = tpu.memref_slice %arg3[%103, %c0_i32_71] : memref<64x128xf32, #tpu.memory_space<any>> -> memref<1x128xf32, #tpu.memory_space<any>>
    %c14_i32_72 = arith.constant 14 : i32
    %c0_i32_73 = arith.constant 0 : i32
    %105 = tpu.memref_slice %arg5[%c14_i32_72, %c0_i32_73] : memref<16x128xf32, #tpu.memory_space<vmem>> -> memref<1x128xf32, #tpu.memory_space<vmem>>
    tpu.enqueue_dma source(%104 : memref<1x128xf32, #tpu.memory_space<any>>) target(%105 : memref<1x128xf32, #tpu.memory_space<vmem>>) target_semaphore(%arg6 : memref<!tpu.dma_semaphore, #tpu.memory_space<semaphore_mem>>)
    %c15_i32 = arith.constant 15 : i32
    %106 = arith.addi %0, %c15_i32 : i32
    %107 = arith.index_cast %106 : i32 to index
    %108 = memref.load %arg1[%107] : memref<16xi32, #tpu.memory_space<smem>>
    %c0_i32_74 = arith.constant 0 : i32
    %c63_i32_75 = arith.constant 63 : i32
    %109 = arith.maxsi %c0_i32_74, %108 : i32
    %110 = arith.minsi %c63_i32_75, %109 : i32
    %c0_i32_76 = arith.constant 0 : i32
    %111 = tpu.memref_slice %arg3[%110, %c0_i32_76] : memref<64x128xf32, #tpu.memory_space<any>> -> memref<1x128xf32, #tpu.memory_space<any>>
    %c15_i32_77 = arith.constant 15 : i32
    %c0_i32_78 = arith.constant 0 : i32
    %112 = tpu.memref_slice %arg5[%c15_i32_77, %c0_i32_78] : memref<16x128xf32, #tpu.memory_space<vmem>> -> memref<1x128xf32, #tpu.memory_space<vmem>>
    tpu.enqueue_dma source(%111 : memref<1x128xf32, #tpu.memory_space<any>>) target(%112 : memref<1x128xf32, #tpu.memory_space<vmem>>) target_semaphore(%arg6 : memref<!tpu.dma_semaphore, #tpu.memory_space<semaphore_mem>>)
    %c0_i32_79 = arith.constant 0 : i32
    %c0_i32_80 = arith.constant 0 : i32
    %113 = tpu.memref_slice %arg3[%c0_i32_79, %c0_i32_80] : memref<64x128xf32, #tpu.memory_space<any>> -> memref<1x128xf32, #tpu.memory_space<any>>
    %c0_i32_81 = arith.constant 0 : i32
    %c0_i32_82 = arith.constant 0 : i32
    %114 = tpu.memref_slice %arg5[%c0_i32_81, %c0_i32_82] : memref<16x128xf32, #tpu.memory_space<vmem>> -> memref<1x128xf32, #tpu.memory_space<vmem>>
    tpu.wait_dma2 semaphore(%arg6 : memref<!tpu.dma_semaphore, #tpu.memory_space<semaphore_mem>>) src(%113 : memref<1x128xf32, #tpu.memory_space<any>>) dst(%114 : memref<1x128xf32, #tpu.memory_space<vmem>>)
    %c0_i32_83 = arith.constant 0 : i32
    %c0_i32_84 = arith.constant 0 : i32
    %115 = tpu.memref_slice %arg3[%c0_i32_83, %c0_i32_84] : memref<64x128xf32, #tpu.memory_space<any>> -> memref<1x128xf32, #tpu.memory_space<any>>
    %c1_i32_85 = arith.constant 1 : i32
    %c0_i32_86 = arith.constant 0 : i32
    %116 = tpu.memref_slice %arg5[%c1_i32_85, %c0_i32_86] : memref<16x128xf32, #tpu.memory_space<vmem>> -> memref<1x128xf32, #tpu.memory_space<vmem>>
    tpu.wait_dma2 semaphore(%arg6 : memref<!tpu.dma_semaphore, #tpu.memory_space<semaphore_mem>>) src(%115 : memref<1x128xf32, #tpu.memory_space<any>>) dst(%116 : memref<1x128xf32, #tpu.memory_space<vmem>>)
    %c0_i32_87 = arith.constant 0 : i32
    %c0_i32_88 = arith.constant 0 : i32
    %117 = tpu.memref_slice %arg3[%c0_i32_87, %c0_i32_88] : memref<64x128xf32, #tpu.memory_space<any>> -> memref<1x128xf32, #tpu.memory_space<any>>
    %c2_i32_89 = arith.constant 2 : i32
    %c0_i32_90 = arith.constant 0 : i32
    %118 = tpu.memref_slice %arg5[%c2_i32_89, %c0_i32_90] : memref<16x128xf32, #tpu.memory_space<vmem>> -> memref<1x128xf32, #tpu.memory_space<vmem>>
    tpu.wait_dma2 semaphore(%arg6 : memref<!tpu.dma_semaphore, #tpu.memory_space<semaphore_mem>>) src(%117 : memref<1x128xf32, #tpu.memory_space<any>>) dst(%118 : memref<1x128xf32, #tpu.memory_space<vmem>>)
    %c0_i32_91 = arith.constant 0 : i32
    %c0_i32_92 = arith.constant 0 : i32
    %119 = tpu.memref_slice %arg3[%c0_i32_91, %c0_i32_92] : memref<64x128xf32, #tpu.memory_space<any>> -> memref<1x128xf32, #tpu.memory_space<any>>
    %c3_i32_93 = arith.constant 3 : i32
    %c0_i32_94 = arith.constant 0 : i32
    %120 = tpu.memref_slice %arg5[%c3_i32_93, %c0_i32_94] : memref<16x128xf32, #tpu.memory_space<vmem>> -> memref<1x128xf32, #tpu.memory_space<vmem>>
    tpu.wait_dma2 semaphore(%arg6 : memref<!tpu.dma_semaphore, #tpu.memory_space<semaphore_mem>>) src(%119 : memref<1x128xf32, #tpu.memory_space<any>>) dst(%120 : memref<1x128xf32, #tpu.memory_space<vmem>>)
    %c0_i32_95 = arith.constant 0 : i32
    %c0_i32_96 = arith.constant 0 : i32
    %121 = tpu.memref_slice %arg3[%c0_i32_95, %c0_i32_96] : memref<64x128xf32, #tpu.memory_space<any>> -> memref<1x128xf32, #tpu.memory_space<any>>
    %c4_i32_97 = arith.constant 4 : i32
    %c0_i32_98 = arith.constant 0 : i32
    %122 = tpu.memref_slice %arg5[%c4_i32_97, %c0_i32_98] : memref<16x128xf32, #tpu.memory_space<vmem>> -> memref<1x128xf32, #tpu.memory_space<vmem>>
    tpu.wait_dma2 semaphore(%arg6 : memref<!tpu.dma_semaphore, #tpu.memory_space<semaphore_mem>>) src(%121 : memref<1x128xf32, #tpu.memory_space<any>>) dst(%122 : memref<1x128xf32, #tpu.memory_space<vmem>>)
    %c0_i32_99 = arith.constant 0 : i32
    %c0_i32_100 = arith.constant 0 : i32
    %123 = tpu.memref_slice %arg3[%c0_i32_99, %c0_i32_100] : memref<64x128xf32, #tpu.memory_space<any>> -> memref<1x128xf32, #tpu.memory_space<any>>
    %c5_i32_101 = arith.constant 5 : i32
    %c0_i32_102 = arith.constant 0 : i32
    %124 = tpu.memref_slice %arg5[%c5_i32_101, %c0_i32_102] : memref<16x128xf32, #tpu.memory_space<vmem>> -> memref<1x128xf32, #tpu.memory_space<vmem>>
    tpu.wait_dma2 semaphore(%arg6 : memref<!tpu.dma_semaphore, #tpu.memory_space<semaphore_mem>>) src(%123 : memref<1x128xf32, #tpu.memory_space<any>>) dst(%124 : memref<1x128xf32, #tpu.memory_space<vmem>>)
    %c0_i32_103 = arith.constant 0 : i32
    %c0_i32_104 = arith.constant 0 : i32
    %125 = tpu.memref_slice %arg3[%c0_i32_103, %c0_i32_104] : memref<64x128xf32, #tpu.memory_space<any>> -> memref<1x128xf32, #tpu.memory_space<any>>
    %c6_i32_105 = arith.constant 6 : i32
    %c0_i32_106 = arith.constant 0 : i32
    %126 = tpu.memref_slice %arg5[%c6_i32_105, %c0_i32_106] : memref<16x128xf32, #tpu.memory_space<vmem>> -> memref<1x128xf32, #tpu.memory_space<vmem>>
    tpu.wait_dma2 semaphore(%arg6 : memref<!tpu.dma_semaphore, #tpu.memory_space<semaphore_mem>>) src(%125 : memref<1x128xf32, #tpu.memory_space<any>>) dst(%126 : memref<1x128xf32, #tpu.memory_space<vmem>>)
    %c0_i32_107 = arith.constant 0 : i32
    %c0_i32_108 = arith.constant 0 : i32
    %127 = tpu.memref_slice %arg3[%c0_i32_107, %c0_i32_108] : memref<64x128xf32, #tpu.memory_space<any>> -> memref<1x128xf32, #tpu.memory_space<any>>
    %c7_i32_109 = arith.constant 7 : i32
    %c0_i32_110 = arith.constant 0 : i32
    %128 = tpu.memref_slice %arg5[%c7_i32_109, %c0_i32_110] : memref<16x128xf32, #tpu.memory_space<vmem>> -> memref<1x128xf32, #tpu.memory_space<vmem>>
    tpu.wait_dma2 semaphore(%arg6 : memref<!tpu.dma_semaphore, #tpu.memory_space<semaphore_mem>>) src(%127 : memref<1x128xf32, #tpu.memory_space<any>>) dst(%128 : memref<1x128xf32, #tpu.memory_space<vmem>>)
    %c0_i32_111 = arith.constant 0 : i32
    %c0_i32_112 = arith.constant 0 : i32
    %129 = tpu.memref_slice %arg3[%c0_i32_111, %c0_i32_112] : memref<64x128xf32, #tpu.memory_space<any>> -> memref<1x128xf32, #tpu.memory_space<any>>
    %c8_i32_113 = arith.constant 8 : i32
    %c0_i32_114 = arith.constant 0 : i32
    %130 = tpu.memref_slice %arg5[%c8_i32_113, %c0_i32_114] : memref<16x128xf32, #tpu.memory_space<vmem>> -> memref<1x128xf32, #tpu.memory_space<vmem>>
    tpu.wait_dma2 semaphore(%arg6 : memref<!tpu.dma_semaphore, #tpu.memory_space<semaphore_mem>>) src(%129 : memref<1x128xf32, #tpu.memory_space<any>>) dst(%130 : memref<1x128xf32, #tpu.memory_space<vmem>>)
    %c0_i32_115 = arith.constant 0 : i32
    %c0_i32_116 = arith.constant 0 : i32
    %131 = tpu.memref_slice %arg3[%c0_i32_115, %c0_i32_116] : memref<64x128xf32, #tpu.memory_space<any>> -> memref<1x128xf32, #tpu.memory_space<any>>
    %c9_i32_117 = arith.constant 9 : i32
    %c0_i32_118 = arith.constant 0 : i32
    %132 = tpu.memref_slice %arg5[%c9_i32_117, %c0_i32_118] : memref<16x128xf32, #tpu.memory_space<vmem>> -> memref<1x128xf32, #tpu.memory_space<vmem>>
    tpu.wait_dma2 semaphore(%arg6 : memref<!tpu.dma_semaphore, #tpu.memory_space<semaphore_mem>>) src(%131 : memref<1x128xf32, #tpu.memory_space<any>>) dst(%132 : memref<1x128xf32, #tpu.memory_space<vmem>>)
    %c0_i32_119 = arith.constant 0 : i32
    %c0_i32_120 = arith.constant 0 : i32
    %133 = tpu.memref_slice %arg3[%c0_i32_119, %c0_i32_120] : memref<64x128xf32, #tpu.memory_space<any>> -> memref<1x128xf32, #tpu.memory_space<any>>
    %c10_i32_121 = arith.constant 10 : i32
    %c0_i32_122 = arith.constant 0 : i32
    %134 = tpu.memref_slice %arg5[%c10_i32_121, %c0_i32_122] : memref<16x128xf32, #tpu.memory_space<vmem>> -> memref<1x128xf32, #tpu.memory_space<vmem>>
    tpu.wait_dma2 semaphore(%arg6 : memref<!tpu.dma_semaphore, #tpu.memory_space<semaphore_mem>>) src(%133 : memref<1x128xf32, #tpu.memory_space<any>>) dst(%134 : memref<1x128xf32, #tpu.memory_space<vmem>>)
    %c0_i32_123 = arith.constant 0 : i32
    %c0_i32_124 = arith.constant 0 : i32
    %135 = tpu.memref_slice %arg3[%c0_i32_123, %c0_i32_124] : memref<64x128xf32, #tpu.memory_space<any>> -> memref<1x128xf32, #tpu.memory_space<any>>
    %c11_i32_125 = arith.constant 11 : i32
    %c0_i32_126 = arith.constant 0 : i32
    %136 = tpu.memref_slice %arg5[%c11_i32_125, %c0_i32_126] : memref<16x128xf32, #tpu.memory_space<vmem>> -> memref<1x128xf32, #tpu.memory_space<vmem>>
    tpu.wait_dma2 semaphore(%arg6 : memref<!tpu.dma_semaphore, #tpu.memory_space<semaphore_mem>>) src(%135 : memref<1x128xf32, #tpu.memory_space<any>>) dst(%136 : memref<1x128xf32, #tpu.memory_space<vmem>>)
    %c0_i32_127 = arith.constant 0 : i32
    %c0_i32_128 = arith.constant 0 : i32
    %137 = tpu.memref_slice %arg3[%c0_i32_127, %c0_i32_128] : memref<64x128xf32, #tpu.memory_space<any>> -> memref<1x128xf32, #tpu.memory_space<any>>
    %c12_i32_129 = arith.constant 12 : i32
    %c0_i32_130 = arith.constant 0 : i32
    %138 = tpu.memref_slice %arg5[%c12_i32_129, %c0_i32_130] : memref<16x128xf32, #tpu.memory_space<vmem>> -> memref<1x128xf32, #tpu.memory_space<vmem>>
    tpu.wait_dma2 semaphore(%arg6 : memref<!tpu.dma_semaphore, #tpu.memory_space<semaphore_mem>>) src(%137 : memref<1x128xf32, #tpu.memory_space<any>>) dst(%138 : memref<1x128xf32, #tpu.memory_space<vmem>>)
    %c0_i32_131 = arith.constant 0 : i32
    %c0_i32_132 = arith.constant 0 : i32
    %139 = tpu.memref_slice %arg3[%c0_i32_131, %c0_i32_132] : memref<64x128xf32, #tpu.memory_space<any>> -> memref<1x128xf32, #tpu.memory_space<any>>
    %c13_i32_133 = arith.constant 13 : i32
    %c0_i32_134 = arith.constant 0 : i32
    %140 = tpu.memref_slice %arg5[%c13_i32_133, %c0_i32_134] : memref<16x128xf32, #tpu.memory_space<vmem>> -> memref<1x128xf32, #tpu.memory_space<vmem>>
    tpu.wait_dma2 semaphore(%arg6 : memref<!tpu.dma_semaphore, #tpu.memory_space<semaphore_mem>>) src(%139 : memref<1x128xf32, #tpu.memory_space<any>>) dst(%140 : memref<1x128xf32, #tpu.memory_space<vmem>>)
    %c0_i32_135 = arith.constant 0 : i32
    %c0_i32_136 = arith.constant 0 : i32
    %141 = tpu.memref_slice %arg3[%c0_i32_135, %c0_i32_136] : memref<64x128xf32, #tpu.memory_space<any>> -> memref<1x128xf32, #tpu.memory_space<any>>
    %c14_i32_137 = arith.constant 14 : i32
    %c0_i32_138 = arith.constant 0 : i32
    %142 = tpu.memref_slice %arg5[%c14_i32_137, %c0_i32_138] : memref<16x128xf32, #tpu.memory_space<vmem>> -> memref<1x128xf32, #tpu.memory_space<vmem>>
    tpu.wait_dma2 semaphore(%arg6 : memref<!tpu.dma_semaphore, #tpu.memory_space<semaphore_mem>>) src(%141 : memref<1x128xf32, #tpu.memory_space<any>>) dst(%142 : memref<1x128xf32, #tpu.memory_space<vmem>>)
    %c0_i32_139 = arith.constant 0 : i32
    %c0_i32_140 = arith.constant 0 : i32
    %143 = tpu.memref_slice %arg3[%c0_i32_139, %c0_i32_140] : memref<64x128xf32, #tpu.memory_space<any>> -> memref<1x128xf32, #tpu.memory_space<any>>
    %c15_i32_141 = arith.constant 15 : i32
    %c0_i32_142 = arith.constant 0 : i32
    %144 = tpu.memref_slice %arg5[%c15_i32_141, %c0_i32_142] : memref<16x128xf32, #tpu.memory_space<vmem>> -> memref<1x128xf32, #tpu.memory_space<vmem>>
    tpu.wait_dma2 semaphore(%arg6 : memref<!tpu.dma_semaphore, #tpu.memory_space<semaphore_mem>>) src(%143 : memref<1x128xf32, #tpu.memory_space<any>>) dst(%144 : memref<1x128xf32, #tpu.memory_space<vmem>>)
    %c0 = arith.constant 0 : index
    %c0_143 = arith.constant 0 : index
    %145 = vector.load %arg5[%c0, %c0_143] : memref<16x128xf32, #tpu.memory_space<vmem>>, vector<16x128xf32>
    %c0_144 = arith.constant 0 : index
    %c0_145 = arith.constant 0 : index
    %146 = vector.load %arg2[%c0_144, %c0_145] : memref<16x128xf32, #tpu.memory_space<vmem>>, vector<16x128xf32>
    %147 = arith.addf %145, %146 : vector<16x128xf32>
    %c0_146 = arith.constant 0 : index
    %c0_147 = arith.constant 0 : index
    %c0_148 = arith.constant 0 : index
    %148 = vector.load %arg4[%c0_146, %c0_147, %c0_148] : memref<1x16x128xf32, #tpu.memory_space<vmem>>, vector<1x16x128xf32>
    %149 = vector.shape_cast %148 : vector<1x16x128xf32> to vector<16x128xf32>
    %150 = vector.shape_cast %147 : vector<16x128xf32> to vector<1x16x128xf32>
    tpu.vector_store %arg4[%c0_146, %c0_147, %c0_148], %150 {strides = array<i32>} : memref<1x16x128xf32, #tpu.memory_space<vmem>>, vector<1x16x128xf32>,
    return
  }
  func.func @transform_0(%arg0: i32, %arg1: memref<16xi32, #tpu.memory_space<smem>>) -> (i32, i32) {
    %c0_i32 = arith.constant 0 : i32
    %c0_i32_0 = arith.constant 0 : i32
    %c0_i32_1 = arith.constant 0 : i32
    return %c0_i32, %c0_i32_0 : i32, i32
  }
  func.func @transform_2(%arg0: i32, %arg1: memref<16xi32, #tpu.memory_space<smem>>) -> (i32, i32, i32) {
    %c0_i32 = arith.constant 0 : i32
    %c0_i32_0 = arith.constant 0 : i32
    %c0_i32_1 = arith.constant 0 : i32
    return %arg0, %c0_i32, %c0_i32_0 : i32, i32, i32
  }
}

</mosaic_0001>

<llo_original>
// kernel: tpu_custom_call.1
$region0: #{tpu_custom_call.1}
  #allocation0 [shape = 'u32[]', space=smem, size = 0x4, offset = 0x4, fixed_abs, tag = 'smem constant byte address 0x4 - core index']
  #allocation1 [shape = 'u32[144,128]{1,0:T(1,128)}', space=vmem, size = 0x12000, scoped, tag = 'internal scratch']
  #allocation2 [shape = 'f32[16,128]{1,0:T(8,128)}', space=vmem, size = 0x2000, scoped, tag = 'scratch operand']
  #allocation3 [shape = 's32[1]{0}', space=sflag, size = 0x4, scoped, tag = 'scratch operand']
  #allocation4 [shape = 's32[1]{0}', space=sflag, size = 0x4, scoped, tag = 'scoped memory for tpu_custom_call.1']
  #allocation5 [shape = 'u8[512]{0}', space=smem, size = 0x200, scoped, tag = 'prefetched SMEM operand 0']
  #allocation10 [shape = 's32[]', space=sflag, size = 0x4, offset = 0, fixed_abs, tag = 'sflag constant byte address 0x0 - dummy sync flag']
  #allocation11 [shape = 's32[]', space=sflag, size = 0x4, offset = 0, fixed_abs, tag = 'sflag constant byte address 0x0 - dummy sync flag']
  #allocation12 [shape = 'u32[]', space=smem, size = 0x4, offset = 0x44, fixed_abs, tag = 'smem constant byte address 0x44 - assertion arg 0']
  #allocation13 [shape = 'u32[]', space=smem, size = 0x4, offset = 0x48, fixed_abs, tag = 'smem constant byte address 0x48 - assertion arg 1']
  #allocation14 [shape = 's32[]', space=sflag, size = 0x4, offset = 0, fixed_abs, tag = 'sflag constant byte address 0x0 - dummy sync flag']
  #allocation15 [shape = 's32[]', space=sflag, size = 0x4, offset = 0, fixed_abs, tag = 'sflag constant byte address 0x0 - dummy sync flag']
  #allocation16 [shape = 's32[]', space=sflag, size = 0x4, offset = 0, fixed_abs, tag = 'sflag constant byte address 0x0 - dummy sync flag']
  #allocation17 [shape = 's32[]', space=sflag, size = 0x4, offset = 0, fixed_abs, tag = 'sflag constant byte address 0x0 - dummy sync flag']
  #allocation18 [shape = 's32[]', space=sflag, size = 0x4, offset = 0, fixed_abs, tag = 'sflag constant byte address 0x0 - dummy sync flag']
  #allocation19 [shape = 's32[]', space=sflag, size = 0x4, offset = 0, fixed_abs, tag = 'sflag constant byte address 0x0 - dummy sync flag']
  #allocation20 [shape = 's32[]', space=sflag, size = 0x4, offset = 0, fixed_abs, tag = 'sflag constant byte address 0x0 - dummy sync flag']
  #allocation21 [shape = 's32[]', space=sflag, size = 0x4, offset = 0, fixed_abs, tag = 'sflag constant byte address 0x0 - dummy sync flag']
  #allocation22 [shape = 's32[]', space=sflag, size = 0x4, offset = 0, fixed_abs, tag = 'sflag constant byte address 0x0 - dummy sync flag']
  #allocation23 [shape = 's32[]', space=sflag, size = 0x4, offset = 0, fixed_abs, tag = 'sflag constant byte address 0x0 - dummy sync flag']
  #allocation24 [shape = 's32[]', space=sflag, size = 0x4, offset = 0, fixed_abs, tag = 'sflag constant byte address 0x0 - dummy sync flag']
  #allocation25 [shape = 's32[]', space=sflag, size = 0x4, offset = 0, fixed_abs, tag = 'sflag constant byte address 0x0 - dummy sync flag']
  #allocation26 [shape = 's32[]', space=sflag, size = 0x4, offset = 0, fixed_abs, tag = 'sflag constant byte address 0x0 - dummy sync flag']
  #allocation27 [shape = 's32[]', space=sflag, size = 0x4, offset = 0, fixed_abs, tag = 'sflag constant byte address 0x0 - dummy sync flag']
  #allocation28 [shape = 's32[]', space=sflag, size = 0x4, offset = 0, fixed_abs, tag = 'sflag constant byte address 0x0 - dummy sync flag']
  #allocation29 [shape = 's32[]', space=sflag, size = 0x4, offset = 0, fixed_abs, tag = 'sflag constant byte address 0x0 - dummy sync flag']
  #allocation30 [shape = 's32[]', space=sflag, size = 0x4, offset = 0, fixed_abs, tag = 'sflag constant byte address 0x0 - dummy sync flag']
  #allocation31 [shape = 's32[]', space=sflag, size = 0x4, offset = 0, fixed_abs, tag = 'sflag constant byte address 0x0 - dummy sync flag']
  #allocation32 [shape = 's32[]', space=sflag, size = 0x4, offset = 0, fixed_abs, tag = 'sflag constant byte address 0x0 - dummy sync flag']
  #allocation33 [shape = 's32[]', space=sflag, size = 0x4, offset = 0, fixed_abs, tag = 'sflag constant byte address 0x0 - dummy sync flag']
  #allocation34 [shape = 's32[]', space=sflag, size = 0x4, offset = 0, fixed_abs, tag = 'sflag constant byte address 0x0 - dummy sync flag']
  #allocation35 [shape = 's32[]', space=sflag, size = 0x4, offset = 0, fixed_abs, tag = 'sflag constant byte address 0x0 - dummy sync flag']
  #allocation36 [shape = 's32[]', space=sflag, size = 0x4, offset = 0, fixed_abs, tag = 'sflag constant byte address 0x0 - dummy sync flag']
  #allocation37 [shape = 's32[]', space=sflag, size = 0x4, offset = 0, fixed_abs, tag = 'sflag constant byte address 0x0 - dummy sync flag']
  #allocation38 [shape = 's32[]', space=sflag, size = 0x4, offset = 0, fixed_abs, tag = 'sflag constant byte address 0x0 - dummy sync flag']
  #allocation39 [shape = 's32[]', space=sflag, size = 0x4, offset = 0, fixed_abs, tag = 'sflag constant byte address 0x0 - dummy sync flag']
  #allocation40 [shape = 's32[]', space=sflag, size = 0x4, offset = 0, fixed_abs, tag = 'sflag constant byte address 0x0 - dummy sync flag']
  #allocation41 [shape = 's32[]', space=sflag, size = 0x4, offset = 0, fixed_abs, tag = 'sflag constant byte address 0x0 - dummy sync flag']
  #allocation42 [shape = 's32[]', space=sflag, size = 0x4, offset = 0, fixed_abs, tag = 'sflag constant byte address 0x0 - dummy sync flag']
  #allocation43 [shape = 's32[]', space=sflag, size = 0x4, offset = 0, fixed_abs, tag = 'sflag constant byte address 0x0 - dummy sync flag']
  %s0 = inlined_call_operand.hbm [shape: s32[16], index: 0, kind: input, shape index: {}]
  %s1 = inlined_call_operand.hbm [shape: f32[16,128], index: 1, kind: input, shape index: {}]
  %s2 = inlined_call_operand.hbm [shape: f32[64,128], index: 2, kind: input, shape index: {}]
  %s3 = inlined_call_operand.hbm [shape: f32[1,16,128], index: 3, kind: output, shape index: {}]
  %s4 = sld [smem:[#allocation0]]
  $region82: #{tpu_custom_call.1} parent=0
    _
  %s6 = ssub.s32 1, %s4
  %s7 = scalar_select 0, %s6, %s4
  %9 = dma.hbm_to_smem %s0, 16, [#allocation5], [#allocation4]
  %10 = dma.done [#allocation4], 16
  %11 = sfence
  $region1: #{tpu_custom_call.1} parent=0
    #allocation6 [shape = 'u8[8192]{0}', space=vmem, size = 0x2000, scoped, tag = 'input window, operand 1, single buffered']
    #allocation7 [shape = 's32[1]{0}', space=sflag, size = 0x4, scoped, tag = 'scoped memory for tpu_custom_call.1']
    #allocation8 [shape = 's32[1]{0}', space=sflag, size = 0x4, scoped, tag = 'scoped memory for tpu_custom_call.1']
    #allocation9 [shape = 'u8[8192]{0}', space=vmem, size = 0x2000, scoped, tag = 'output window, operand 0, single buffered']
    %12 = vsyncpa [#allocation7], 0
    %13 = vsyncpa [#allocation8], 0
    // Predicated region
    $region2: #{tpu_custom_call.1} parent=1 // pred_check
      _
    $region3: #{tpu_custom_call.1} parent=1 // pred_check_branch
      %15 = sbr.rel (0) target = $region5
    $region4: #{tpu_custom_call.1} parent=1 // pred_region
      %s17 = ssub.s32 256, 256
      %18 = vsyncadd [#allocation7], %s17
      %s19 = sshll.u32 [#allocation6], 4
      %s20 = int_to_ptr.vmem [resolvable:$true] %s19
      %25 = dma.hbm_to_vmem [thread:$0]  %s1, 256, %s20, [#allocation7], 128, 128, 8
    $region5: #{tpu_custom_call.1} parent=1 // pred_fallthru
      _
    // Predicated region
    $region6: #{tpu_custom_call.1} parent=1 // pred_check
      _
    $region7: #{tpu_custom_call.1} parent=1 // pred_check_branch
      %27 = sbr.rel (0) target = $region9
    $region8: #{tpu_custom_call.1} parent=1 // pred_region
      %28 = dma.done [#allocation7], 256
    $region9: #{tpu_custom_call.1} parent=1 // pred_fallthru
      _
    %s29 = smul.u32 0, 16
    %s30 = sld [smem:[#allocation5 + %s29]]
    %p31 = scmp.gt.s32.totalorder %s30, 0
    %s32 = scalar_select %p31, %s30, 0
    %p33 = scmp.lt.s32.totalorder %s32, 63
    %s34 = scalar_select %p33, %s32, 63
    %s35 = smul.addr %s34, 16
    %s36 = scalar_lea.hbm %s2, %s35
    // Predicated region
    $region10: #{tpu_custom_call.1} parent=1 // pred_check
      _
    $region11: #{tpu_custom_call.1} parent=1 // pred_check_branch
      %38 = sbr.rel target = $region13
    $region12: #{tpu_custom_call.1} parent=1 // pred_region
      %39 = sst [smem:[#allocation12]] [#allocation11]
      %40 = sst [smem:[#allocation13]] [#allocation10]
    $region13: #{tpu_custom_call.1} parent=1 // pred_fallthru
      _
    %42 = shalt.err (0)
    %s44 = sshll.u32 [#allocation2], 4
    %s45 = int_to_ptr.vmem [resolvable:$true] %s44
    %47 = dma.hbm_to_vmem [thread:$0]  %s36, 16, %s45, [#allocation3]
    %s48 = sadd.s32 %s29, 1
    %s49 = sld [smem:[#allocation5 + %s48]]
    %p50 = scmp.gt.s32.totalorder %s49, 0
    %s51 = scalar_select %p50, %s49, 0
    %p52 = scmp.lt.s32.totalorder %s51, 63
    %s53 = scalar_select %p52, %s51, 63
    %s54 = smul.addr %s53, 16
    %s55 = scalar_lea.hbm %s2, %s54
    %s56 = scalar_lea.vmem [#allocation2], 1
    // Predicated region
    $region14: #{tpu_custom_call.1} parent=1 // pred_check
      _
    $region15: #{tpu_custom_call.1} parent=1 // pred_check_branch
      %58 = sbr.rel target = $region17
    $region16: #{tpu_custom_call.1} parent=1 // pred_region
      %59 = sst [smem:[#allocation12]] [#allocation15]
      %60 = sst [smem:[#allocation13]] [#allocation14]
    $region17: #{tpu_custom_call.1} parent=1 // pred_fallthru
      _
    %62 = shalt.err (0)
    %s64 = sshll.u32 %s56, 4
    %s65 = int_to_ptr.vmem [resolvable:$true] %s64
    %67 = dma.hbm_to_vmem [thread:$0]  %s55, 16, %s65, [#allocation3]
    %s68 = sadd.s32 %s29, 2
    %s69 = sld [smem:[#allocation5 + %s68]]
    %p70 = scmp.gt.s32.totalorder %s69, 0
    %s71 = scalar_select %p70, %s69, 0
    %p72 = scmp.lt.s32.totalorder %s71, 63
    %s73 = scalar_select %p72, %s71, 63
    %s74 = smul.addr %s73, 16
    %s75 = scalar_lea.hbm %s2, %s74
    %s76 = scalar_lea.vmem [#allocation2], 2
    // Predicated region
    $region18: #{tpu_custom_call.1} parent=1 // pred_check
      _
    $region19: #{tpu_custom_call.1} parent=1 // pred_check_branch
      %78 = sbr.rel target = $region21
    $region20: #{tpu_custom_call.1} parent=1 // pred_region
      %79 = sst [smem:[#allocation12]] [#allocation17]
      %80 = sst [smem:[#allocation13]] [#allocation16]
    $region21: #{tpu_custom_call.1} parent=1 // pred_fallthru
      _
    %82 = shalt.err (0)
    %s84 = sshll.u32 %s76, 4
    %s85 = int_to_ptr.vmem [resolvable:$true] %s84
    %87 = dma.hbm_to_vmem [thread:$0]  %s75, 16, %s85, [#allocation3]
    %s88 = sadd.s32 %s29, 3
    %s89 = sld [smem:[#allocation5 + %s88]]
    %p90 = scmp.gt.s32.totalorder %s89, 0
    %s91 = scalar_select %p90, %s89, 0
    %p92 = scmp.lt.s32.totalorder %s91, 63
    %s93 = scalar_select %p92, %s91, 63
    %s94 = smul.addr %s93, 16
    %s95 = scalar_lea.hbm %s2, %s94
    %s96 = scalar_lea.vmem [#allocation2], 3
    // Predicated region
    $region22: #{tpu_custom_call.1} parent=1 // pred_check
      _
    $region23: #{tpu_custom_call.1} parent=1 // pred_check_branch
      %98 = sbr.rel target = $region25
    $region24: #{tpu_custom_call.1} parent=1 // pred_region
      %99 = sst [smem:[#allocation12]] [#allocation19]
      %100 = sst [smem:[#allocation13]] [#allocation18]
    $region25: #{tpu_custom_call.1} parent=1 // pred_fallthru
      _
    %102 = shalt.err (0)
    %s104 = sshll.u32 %s96, 4
    %s105 = int_to_ptr.vmem [resolvable:$true] %s104
    %107 = dma.hbm_to_vmem [thread:$0]  %s95, 16, %s105, [#allocation3]
    %s108 = sadd.s32 %s29, 4
    %s109 = sld [smem:[#allocation5 + %s108]]
    %p110 = scmp.gt.s32.totalorder %s109, 0
    %s111 = scalar_select %p110, %s109, 0
    %p112 = scmp.lt.s32.totalorder %s111, 63
    %s113 = scalar_select %p112, %s111, 63
    %s114 = smul.addr %s113, 16
    %s115 = scalar_lea.hbm %s2, %s114
    %s116 = scalar_lea.vmem [#allocation2], 4
    // Predicated region
    $region26: #{tpu_custom_call.1} parent=1 // pred_check
      _
    $region27: #{tpu_custom_call.1} parent=1 // pred_check_branch
      %118 = sbr.rel target = $region29
    $region28: #{tpu_custom_call.1} parent=1 // pred_region
      %119 = sst [smem:[#allocation12]] [#allocation21]
      %120 = sst [smem:[#allocation13]] [#allocation20]
    $region29: #{tpu_custom_call.1} parent=1 // pred_fallthru
      _
    %122 = shalt.err (0)
    %s124 = sshll.u32 %s116, 4
    %s125 = int_to_ptr.vmem [resolvable:$true] %s124
    %127 = dma.hbm_to_vmem [thread:$0]  %s115, 16, %s125, [#allocation3]
    %s128 = sadd.s32 %s29, 5
    %s129 = sld [smem:[#allocation5 + %s128]]
    %p130 = scmp.gt.s32.totalorder %s129, 0
    %s131 = scalar_select %p130, %s129, 0
    %p132 = scmp.lt.s32.totalorder %s131, 63
    %s133 = scalar_select %p132, %s131, 63
    %s134 = smul.addr %s133, 16
    %s135 = scalar_lea.hbm %s2, %s134
    %s136 = scalar_lea.vmem [#allocation2], 5
    // Predicated region
    $region30: #{tpu_custom_call.1} parent=1 // pred_check
      _
    $region31: #{tpu_custom_call.1} parent=1 // pred_check_branch
      %138 = sbr.rel target = $region33
    $region32: #{tpu_custom_call.1} parent=1 // pred_region
      %139 = sst [smem:[#allocation12]] [#allocation23]
      %140 = sst [smem:[#allocation13]] [#allocation22]
    $region33: #{tpu_custom_call.1} parent=1 // pred_fallthru
      _
    %142 = shalt.err (0)
    %s144 = sshll.u32 %s136, 4
    %s145 = int_to_ptr.vmem [resolvable:$true] %s144
    %147 = dma.hbm_to_vmem [thread:$0]  %s135, 16, %s145, [#allocation3]
    %s148 = sadd.s32 %s29, 6
    %s149 = sld [smem:[#allocation5 + %s148]]
    %p150 = scmp.gt.s32.totalorder %s149, 0
    %s151 = scalar_select %p150, %s149, 0
    %p152 = scmp.lt.s32.totalorder %s151, 63
    %s153 = scalar_select %p152, %s151, 63
    %s154 = smul.addr %s153, 16
    %s155 = scalar_lea.hbm %s2, %s154
    %s156 = scalar_lea.vmem [#allocation2], 6
    // Predicated region
    $region34: #{tpu_custom_call.1} parent=1 // pred_check
      _
    $region35: #{tpu_custom_call.1} parent=1 // pred_check_branch
      %158 = sbr.rel target = $region37
    $region36: #{tpu_custom_call.1} parent=1 // pred_region
      %159 = sst [smem:[#allocation12]] [#allocation25]
      %160 = sst [smem:[#allocation13]] [#allocation24]
    $region37: #{tpu_custom_call.1} parent=1 // pred_fallthru
      _
    %162 = shalt.err (0)
    %s164 = sshll.u32 %s156, 4
    %s165 = int_to_ptr.vmem [resolvable:$true] %s164
    %167 = dma.hbm_to_vmem [thread:$0]  %s155, 16, %s165, [#allocation3]
    %s168 = sadd.s32 %s29, 7
    %s169 = sld [smem:[#allocation5 + %s168]]
    %p170 = scmp.gt.s32.totalorder %s169, 0
    %s171 = scalar_select %p170, %s169, 0
    %p172 = scmp.lt.s32.totalorder %s171, 63
    %s173 = scalar_select %p172, %s171, 63
    %s174 = smul.addr %s173, 16
    %s175 = scalar_lea.hbm %s2, %s174
    %s176 = scalar_lea.vmem [#allocation2], 7
    // Predicated region
    $region38: #{tpu_custom_call.1} parent=1 // pred_check
      _
    $region39: #{tpu_custom_call.1} parent=1 // pred_check_branch
      %178 = sbr.rel target = $region41
    $region40: #{tpu_custom_call.1} parent=1 // pred_region
      %179 = sst [smem:[#allocation12]] [#allocation27]
      %180 = sst [smem:[#allocation13]] [#allocation26]
    $region41: #{tpu_custom_call.1} parent=1 // pred_fallthru
      _
    %182 = shalt.err (0)
    %s184 = sshll.u32 %s176, 4
    %s185 = int_to_ptr.vmem [resolvable:$true] %s184
    %187 = dma.hbm_to_vmem [thread:$0]  %s175, 16, %s185, [#allocation3]
    %s188 = sadd.s32 %s29, 8
    %s189 = sld [smem:[#allocation5 + %s188]]
    %p190 = scmp.gt.s32.totalorder %s189, 0
    %s191 = scalar_select %p190, %s189, 0
    %p192 = scmp.lt.s32.totalorder %s191, 63
    %s193 = scalar_select %p192, %s191, 63
    %s194 = smul.addr %s193, 16
    %s195 = scalar_lea.hbm %s2, %s194
    %s196 = scalar_lea.vmem [#allocation2], 8
    // Predicated region
    $region42: #{tpu_custom_call.1} parent=1 // pred_check
      _
    $region43: #{tpu_custom_call.1} parent=1 // pred_check_branch
      %198 = sbr.rel target = $region45
    $region44: #{tpu_custom_call.1} parent=1 // pred_region
      %199 = sst [smem:[#allocation12]] [#allocation29]
      %200 = sst [smem:[#allocation13]] [#allocation28]
    $region45: #{tpu_custom_call.1} parent=1 // pred_fallthru
      _
    %202 = shalt.err (0)
    %s204 = sshll.u32 %s196, 4
    %s205 = int_to_ptr.vmem [resolvable:$true] %s204
    %207 = dma.hbm_to_vmem [thread:$0]  %s195, 16, %s205, [#allocation3]
    %s208 = sadd.s32 %s29, 9
    %s209 = sld [smem:[#allocation5 + %s208]]
    %p210 = scmp.gt.s32.totalorder %s209, 0
    %s211 = scalar_select %p210, %s209, 0
    %p212 = scmp.lt.s32.totalorder %s211, 63
    %s213 = scalar_select %p212, %s211, 63
    %s214 = smul.addr %s213, 16
    %s215 = scalar_lea.hbm %s2, %s214
    %s216 = scalar_lea.vmem [#allocation2], 9
    // Predicated region
    $region46: #{tpu_custom_call.1} parent=1 // pred_check
      _
    $region47: #{tpu_custom_call.1} parent=1 // pred_check_branch
      %218 = sbr.rel target = $region49
    $region48: #{tpu_custom_call.1} parent=1 // pred_region
      %219 = sst [smem:[#allocation12]] [#allocation31]
      %220 = sst [smem:[#allocation13]] [#allocation30]
    $region49: #{tpu_custom_call.1} parent=1 // pred_fallthru
      _
    %222 = shalt.err (0)
    %s224 = sshll.u32 %s216, 4
    %s225 = int_to_ptr.vmem [resolvable:$true] %s224
    %227 = dma.hbm_to_vmem [thread:$0]  %s215, 16, %s225, [#allocation3]
    %s228 = sadd.s32 %s29, 10
    %s229 = sld [smem:[#allocation5 + %s228]]
    %p230 = scmp.gt.s32.totalorder %s229, 0
    %s231 = scalar_select %p230, %s229, 0
    %p232 = scmp.lt.s32.totalorder %s231, 63
    %s233 = scalar_select %p232, %s231, 63
    %s234 = smul.addr %s233, 16
    %s235 = scalar_lea.hbm %s2, %s234
    %s236 = scalar_lea.vmem [#allocation2], 10
    // Predicated region
    $region50: #{tpu_custom_call.1} parent=1 // pred_check
      _
    $region51: #{tpu_custom_call.1} parent=1 // pred_check_branch
      %238 = sbr.rel target = $region53
    $region52: #{tpu_custom_call.1} parent=1 // pred_region
      %239 = sst [smem:[#allocation12]] [#allocation33]
      %240 = sst [smem:[#allocation13]] [#allocation32]
    $region53: #{tpu_custom_call.1} parent=1 // pred_fallthru
      _
    %242 = shalt.err (0)
    %s244 = sshll.u32 %s236, 4
    %s245 = int_to_ptr.vmem [resolvable:$true] %s244
    %247 = dma.hbm_to_vmem [thread:$0]  %s235, 16, %s245, [#allocation3]
    %s248 = sadd.s32 %s29, 11
    %s249 = sld [smem:[#allocation5 + %s248]]
    %p250 = scmp.gt.s32.totalorder %s249, 0
    %s251 = scalar_select %p250, %s249, 0
    %p252 = scmp.lt.s32.totalorder %s251, 63
    %s253 = scalar_select %p252, %s251, 63
    %s254 = smul.addr %s253, 16
    %s255 = scalar_lea.hbm %s2, %s254
    %s256 = scalar_lea.vmem [#allocation2], 11
    // Predicated region
    $region54: #{tpu_custom_call.1} parent=1 // pred_check
      _
    $region55: #{tpu_custom_call.1} parent=1 // pred_check_branch
      %258 = sbr.rel target = $region57
    $region56: #{tpu_custom_call.1} parent=1 // pred_region
      %259 = sst [smem:[#allocation12]] [#allocation35]
      %260 = sst [smem:[#allocation13]] [#allocation34]
    $region57: #{tpu_custom_call.1} parent=1 // pred_fallthru
      _
    %262 = shalt.err (0)
    %s264 = sshll.u32 %s256, 4
    %s265 = int_to_ptr.vmem [resolvable:$true] %s264
    %267 = dma.hbm_to_vmem [thread:$0]  %s255, 16, %s265, [#allocation3]
    %s268 = sadd.s32 %s29, 12
    %s269 = sld [smem:[#allocation5 + %s268]]
    %p270 = scmp.gt.s32.totalorder %s269, 0
    %s271 = scalar_select %p270, %s269, 0
    %p272 = scmp.lt.s32.totalorder %s271, 63
    %s273 = scalar_select %p272, %s271, 63
    %s274 = smul.addr %s273, 16
    %s275 = scalar_lea.hbm %s2, %s274
    %s276 = scalar_lea.vmem [#allocation2], 12
    // Predicated region
    $region58: #{tpu_custom_call.1} parent=1 // pred_check
      _
    $region59: #{tpu_custom_call.1} parent=1 // pred_check_branch
      %278 = sbr.rel target = $region61
    $region60: #{tpu_custom_call.1} parent=1 // pred_region
      %279 = sst [smem:[#allocation12]] [#allocation37]
      %280 = sst [smem:[#allocation13]] [#allocation36]
    $region61: #{tpu_custom_call.1} parent=1 // pred_fallthru
      _
    %282 = shalt.err (0)
    %s284 = sshll.u32 %s276, 4
    %s285 = int_to_ptr.vmem [resolvable:$true] %s284
    %287 = dma.hbm_to_vmem [thread:$0]  %s275, 16, %s285, [#allocation3]
    %s288 = sadd.s32 %s29, 13
    %s289 = sld [smem:[#allocation5 + %s288]]
    %p290 = scmp.gt.s32.totalorder %s289, 0
    %s291 = scalar_select %p290, %s289, 0
    %p292 = scmp.lt.s32.totalorder %s291, 63
    %s293 = scalar_select %p292, %s291, 63
    %s294 = smul.addr %s293, 16
    %s295 = scalar_lea.hbm %s2, %s294
    %s296 = scalar_lea.vmem [#allocation2], 13
    // Predicated region
    $region62: #{tpu_custom_call.1} parent=1 // pred_check
      _
    $region63: #{tpu_custom_call.1} parent=1 // pred_check_branch
      %298 = sbr.rel target = $region65
    $region64: #{tpu_custom_call.1} parent=1 // pred_region
      %299 = sst [smem:[#allocation12]] [#allocation39]
      %300 = sst [smem:[#allocation13]] [#allocation38]
    $region65: #{tpu_custom_call.1} parent=1 // pred_fallthru
      _
    %302 = shalt.err (0)
    %s304 = sshll.u32 %s296, 4
    %s305 = int_to_ptr.vmem [resolvable:$true] %s304
    %307 = dma.hbm_to_vmem [thread:$0]  %s295, 16, %s305, [#allocation3]
    %s308 = sadd.s32 %s29, 14
    %s309 = sld [smem:[#allocation5 + %s308]]
    %p310 = scmp.gt.s32.totalorder %s309, 0
    %s311 = scalar_select %p310, %s309, 0
    %p312 = scmp.lt.s32.totalorder %s311, 63
    %s313 = scalar_select %p312, %s311, 63
    %s314 = smul.addr %s313, 16
    %s315 = scalar_lea.hbm %s2, %s314
    %s316 = scalar_lea.vmem [#allocation2], 14
    // Predicated region
    $region66: #{tpu_custom_call.1} parent=1 // pred_check
      _
    $region67: #{tpu_custom_call.1} parent=1 // pred_check_branch
      %318 = sbr.rel target = $region69
    $region68: #{tpu_custom_call.1} parent=1 // pred_region
      %319 = sst [smem:[#allocation12]] [#allocation41]
      %320 = sst [smem:[#allocation13]] [#allocation40]
    $region69: #{tpu_custom_call.1} parent=1 // pred_fallthru
      _
    %322 = shalt.err (0)
    %s324 = sshll.u32 %s316, 4
    %s325 = int_to_ptr.vmem [resolvable:$true] %s324
    %327 = dma.hbm_to_vmem [thread:$0]  %s315, 16, %s325, [#allocation3]
    %s328 = sadd.s32 %s29, 15
    %s329 = sld [smem:[#allocation5 + %s328]]
    %p330 = scmp.gt.s32.totalorder %s329, 0
    %s331 = scalar_select %p330, %s329, 0
    %p332 = scmp.lt.s32.totalorder %s331, 63
    %s333 = scalar_select %p332, %s331, 63
    %s334 = smul.addr %s333, 16
    %s335 = scalar_lea.hbm %s2, %s334
    %s336 = scalar_lea.vmem [#allocation2], 15
    // Predicated region
    $region70: #{tpu_custom_call.1} parent=1 // pred_check
      _
    $region71: #{tpu_custom_call.1} parent=1 // pred_check_branch
      %338 = sbr.rel target = $region73
    $region72: #{tpu_custom_call.1} parent=1 // pred_region
      %339 = sst [smem:[#allocation12]] [#allocation43]
      %340 = sst [smem:[#allocation13]] [#allocation42]
    $region73: #{tpu_custom_call.1} parent=1 // pred_fallthru
      _
    %342 = shalt.err (0)
    %s344 = sshll.u32 %s336, 4
    %s345 = int_to_ptr.vmem [resolvable:$true] %s344
    %347 = dma.hbm_to_vmem [thread:$0]  %s335, 16, %s345, [#allocation3]
    %s348 = smul.u32 1, 1
    %s349 = sshll.u32 %s348, 4
    %350 = dma.done [#allocation3], %s349
    %s351 = sshll.u32 %s348, 4
    %352 = dma.done [#allocation3], %s351
    %s353 = sshll.u32 %s348, 4
    %354 = dma.done [#allocation3], %s353
    %s355 = sshll.u32 %s348, 4
    %356 = dma.done [#allocation3], %s355
    %s357 = sshll.u32 %s348, 4
    %358 = dma.done [#allocation3], %s357
    %s359 = sshll.u32 %s348, 4
    %360 = dma.done [#allocation3], %s359
    %s361 = sshll.u32 %s348, 4
    %362 = dma.done [#allocation3], %s361
    %s363 = sshll.u32 %s348, 4
    %364 = dma.done [#allocation3], %s363
    %s365 = sshll.u32 %s348, 4
    %366 = dma.done [#allocation3], %s365
    %s367 = sshll.u32 %s348, 4
    %368 = dma.done [#allocation3], %s367
    %s369 = sshll.u32 %s348, 4
    %370 = dma.done [#allocation3], %s369
    %s371 = sshll.u32 %s348, 4
    %372 = dma.done [#allocation3], %s371
    %s373 = sshll.u32 %s348, 4
    %374 = dma.done [#allocation3], %s373
    %s375 = sshll.u32 %s348, 4
    %376 = dma.done [#allocation3], %s375
    %s377 = sshll.u32 %s348, 4
    %378 = dma.done [#allocation3], %s377
    %s379 = sshll.u32 %s348, 4
    %380 = dma.done [#allocation3], %s379
    %v381 = vld [vmem:[#allocation2] sm:$0xff]
    %v382 = vld [vmem:[#allocation2 + $0x8] sm:$0xff]
    %v383 = vld [vmem:[#allocation6] sm:$0xff]
    %v384 = vld [vmem:[#allocation6 + $0x8] sm:$0xff]
    %v385 = vadd.f32 %v381, %v383
    %v386 = vadd.f32 %v382, %v384
    %387 = vst [vmem:[#allocation9] sm:$0xff] %v385
    %388 = vst [vmem:[#allocation9 + $0x8] sm:$0xff] %v386
    // Predicated region
    $region74: #{tpu_custom_call.1} parent=1 // pred_check
      _
    $region75: #{tpu_custom_call.1} parent=1 // pred_check_branch
      %390 = sbr.rel (0) target = $region77
    $region76: #{tpu_custom_call.1} parent=1 // pred_region
      %s392 = ssub.s32 256, 256
      %393 = vsyncadd [#allocation8], %s392
      %s394 = sshll.u32 [#allocation9], 4
      %s395 = int_to_ptr.vmem [resolvable:$true] %s394
      %400 = dma.vmem_to_hbm [thread:$0]  %s395, 256, %s3, [#allocation8], 128, 128, 8
    $region77: #{tpu_custom_call.1} parent=1 // pred_fallthru
      _
    // Predicated region
    $region78: #{tpu_custom_call.1} parent=1 // pred_check
      _
    $region79: #{tpu_custom_call.1} parent=1 // pred_check_branch
      %402 = sbr.rel (0) target = $region81
    $region80: #{tpu_custom_call.1} parent=1 // pred_region
      %403 = dma.done [#allocation8], 256
    $region81: #{tpu_custom_call.1} parent=1 // pred_fallthru
      _
    %404 = vsyncpa [#allocation7], 1
    %405 = vsyncpa [#allocation8], 1
  %406 = vsyncmov [#allocation3]
  %s407 = vpop.sfrf %406
  %p408 = scmp.eq.s32.totalorder %s407, 0
  %p409 = pneg %p408
  %411 = shalt.err (%p409)

</llo_original>
